<compile_context>
chip_gen: v5e
topology: v5e:2x2
jax: 0.10.0
libtpu: 0.0.40
codegen_flags: <defaults>
</compile_context>

<pallas_src>
import functools

import jax
import jax.numpy as jnp
from jax import lax
from jax.experimental import pallas as pl
from jax.experimental.pallas import tpu as pltpu


# ---------------------------------------------------------------------------
# Fused QKV-projection + flash-style causal attention kernel.
# One grid step = (batch b, q-tile qi).
# ---------------------------------------------------------------------------
def _fused_attention_kernel(xq_ref, xkv_ref, wq_ref, wkv_ref, o_ref,
                            k_sc, v_sc, *, scale, head_size, tile):
    # xq_ref : (tile, C)  rows of x for this q tile
    # xkv_ref: (T, C)     all rows of x for batch b (DMA'd only when b changes)
    # wq_ref : (C, H)     transposed query weight
    # wkv_ref: (C, 2H)    transposed [key | value] weights (one MXU pass)
    # o_ref  : (tile, H)
    # k_sc   : (T, H)     K for batch b, resident across all qi steps
    # v_sc   : (T, H)     V for batch b
    qi = pl.program_id(1)
    H = head_size

    # ---- project K/V for this batch element once, keep resident in VMEM ----
    @pl.when(qi == 0)
    def _project_kv():
        kv = jnp.dot(xkv_ref[...], wkv_ref[...],
                     preferred_element_type=jnp.float32)          # (T, 2H) f32
        k_sc[...] = kv[:, :H].astype(k_sc.dtype)
        v_sc[...] = kv[:, H:].astype(v_sc.dtype)

    # ---- project this q tile; fold embed_size**-0.5 into q (O(T*H)) --------
    q = (jnp.dot(xq_ref[...], wq_ref[...],
                 preferred_element_type=jnp.float32) * scale).astype(k_sc.dtype)

    # ---- online-softmax update (all f32 on VPU/EUP) -------------------------
    def _update(carry, s, v_blk):
        m, l, acc = carry
        m_new = jnp.maximum(m, jnp.max(s, axis=-1, keepdims=True))
        alpha = jnp.exp(m - m_new)                    # exp(-inf) = 0 first time
        p = jnp.exp(s - m_new)
        l_new = alpha * l + jnp.sum(p, axis=-1, keepdims=True)
        acc_new = alpha * acc + jnp.dot(p.astype(v_blk.dtype), v_blk,
                                        preferred_element_type=jnp.float32)
        return m_new, l_new, acc_new

    # ---- kv tiles strictly below the causal diagonal: mask-free ------------
    def _body(ki, carry):
        start = pl.multiple_of(ki * tile, tile)
        k_blk = k_sc[pl.ds(start, tile), :]
        v_blk = v_sc[pl.ds(start, tile), :]
        s = lax.dot_general(q, k_blk, (((1,), (1,)), ((), ())),
                            preferred_element_type=jnp.float32)   # (tile, tile)
        return _update(carry, s, v_blk)

    m0 = jnp.full((tile, 1), -jnp.inf, dtype=jnp.float32)
    l0 = jnp.zeros((tile, 1), dtype=jnp.float32)
    acc0 = jnp.zeros((tile, H), dtype=jnp.float32)
    m, l, acc = lax.fori_loop(0, qi, _body, (m0, l0, acc0))

    # ---- diagonal kv tile: the only place the causal mask bites ------------
    start = pl.multiple_of(qi * tile, tile)
    k_blk = k_sc[pl.ds(start, tile), :]
    v_blk = v_sc[pl.ds(start, tile), :]
    s = lax.dot_general(q, k_blk, (((1,), (1,)), ((), ())),
                        preferred_element_type=jnp.float32)
    # tq == tk, so local iotas are enough on the diagonal tile.
    row = lax.broadcasted_iota(jnp.int32, (tile, tile), 0)
    col = lax.broadcasted_iota(jnp.int32, (tile, tile), 1)
    s = jnp.where(col <= row, s, -jnp.inf)
    m, l, acc = _update((m, l, acc), s, v_blk)

    # Exact reciprocal: (tile, 1) vector, negligible cost, f32-level accuracy.
    inv_l = pl.reciprocal(l, approx=False)
    o_ref[...] = (acc * inv_l).astype(o_ref.dtype)


# ---------------------------------------------------------------------------
# Wrapper.
# ---------------------------------------------------------------------------
def attention_head(embeddings, wq, wk, wv, embed_size, *, seq_tile=128):
    """embeddings: (B, T, C); wq/wk/wv: (H, C) PyTorch Linear layout.

    Works for f32 or bf16 inputs: matmul operands stay in the input dtype,
    accumulation and softmax are f32.
    """
    B, T, C = embeddings.shape
    H = wq.shape[0]
    assert wq.shape == (H, C) and wk.shape == (H, C) and wv.shape == (H, C)
    dtype = embeddings.dtype
    itemsize = jnp.dtype(dtype).itemsize
    scale = float(embed_size) ** (-0.5)

    tile = min(seq_tile, T)
    assert T % tile == 0, "sequence tile must divide T"
    nt = T // tile

    # Pre-transposed weights: (C, H) for q, fused (C, 2H) for [k | v].
    wq_t = wq.T.astype(dtype)
    wkv_t = jnp.concatenate([wk.T, wv.T], axis=1).astype(dtype)

    cost = pl.CostEstimate(
        # QKV projection + causal QK^T and PV (~half of the dense 2*2*T*T*H).
        flops=2 * B * T * C * 3 * H + 2 * B * T * T * H,
        transcendentals=B * T * (T + 2) // 2,
        # x is streamed ~twice (q-tiles + one whole-batch copy per b); K/V are
        # never written back to HBM; weights are tiny and fetched once.
        bytes_accessed=(2 * B * T * C + C * 3 * H + B * T * H) * itemsize,
    )

    xq_spec = pl.BlockSpec((pl.Squeezed(), tile, C), lambda b, qi: (b, qi, 0))
    # Whole-batch x block: index only depends on b, so Pallas elides the DMA
    # across qi steps.
    xkv_spec = pl.BlockSpec((pl.Squeezed(), T, C), lambda b, qi: (b, 0, 0))
    wq_spec = pl.BlockSpec((C, H), lambda b, qi: (0, 0))
    wkv_spec = pl.BlockSpec((C, 2 * H), lambda b, qi: (0, 0))
    out_spec = pl.BlockSpec((pl.Squeezed(), tile, H), lambda b, qi: (b, qi, 0))

    return pl.pallas_call(
        functools.partial(_fused_attention_kernel, scale=scale,
                          head_size=H, tile=tile),
        out_shape=jax.ShapeDtypeStruct((B, T, H), dtype),
        grid_spec=pltpu.PrefetchScalarGridSpec(
            num_scalar_prefetch=0,
            grid=(B, nt),
            in_specs=[xq_spec, xkv_spec, wq_spec, wkv_spec],
            out_specs=out_spec,
            scratch_shapes=[
                pltpu.VMEM((T, H), dtype),   # resident K for current batch
                pltpu.VMEM((T, H), dtype),   # resident V for current batch
            ],
        ),
        # qi must be "arbitrary": K/V scratch written at qi==0 is reused by
        # later qi steps of the same batch element.  b is independent.
        compiler_params=pltpu.CompilerParams(
            dimension_semantics=("parallel", "arbitrary")),
        cost_estimate=cost,
    )(embeddings, embeddings, wq_t, wkv_t)


# ---------------------------------------------------------------------------
# Pure-JAX reference mirroring the PyTorch forward.
# ---------------------------------------------------------------------------
def attention_head_reference(embeddings, wq, wk, wv, embed_size):
    q = embeddings @ wq.T
    k = embeddings @ wk.T
    v = embeddings @ wv.T
    wei = (q @ jnp.swapaxes(k, -2, -1)) * (float(embed_size) ** -0.5)
    T = embeddings.shape[1]
    tril = jnp.tril(jnp.ones((T, T), dtype=bool))
    wei = jnp.where(tril, wei, -jnp.inf)
    wei = jax.nn.softmax(wei, axis=-1)
    return wei @ v


if __name__ == "__main__":
    # Small, module-consistent shapes.
    B, T = 2, 8                 # batch, sequence length (== block_size)
    embed_size = 32             # C
    head_size = 16              # H
    block_size = T
    # dropout = 0.1             # constructed but unused in forward()

    key = jax.random.PRNGKey(0)
    kx, kq, kk, kv = jax.random.split(key, 4)

    embeddings = jax.random.normal(kx, (B, T, embed_size), dtype=jnp.float32)
    # Deterministic "Linear" weights, PyTorch layout (head_size, embed_size).
    wq = jax.random.normal(kq, (head_size, embed_size), dtype=jnp.float32) * 0.1
    wk = jax.random.normal(kk, (head_size, embed_size), dtype=jnp.float32) * 0.1
    wv = jax.random.normal(kv, (head_size, embed_size), dtype=jnp.float32) * 0.1

    ref = attention_head_reference(embeddings, wq, wk, wv, embed_size)

    # f32 path — exact reciprocal now, so tolerance is tight.
    out = attention_head(embeddings, wq, wk, wv, embed_size)
    out = jax.block_until_ready(out)
    assert out.shape == (B, T, head_size)
    assert jnp.allclose(out, ref, atol=1e-4, rtol=1e-4), "f32 mismatch vs reference"

    # bf16 MXU-operand path (f32 accumulation + f32 softmax inside the kernel).
    out_bf16 = attention_head(
        embeddings.astype(jnp.bfloat16),
        wq.astype(jnp.bfloat16),
        wk.astype(jnp.bfloat16),
        wv.astype(jnp.bfloat16),
        embed_size,
    )
    out_bf16 = jax.block_until_ready(out_bf16)
    assert out_bf16.shape == (B, T, head_size)
    assert jnp.allclose(out_bf16.astype(jnp.float32), ref, atol=3e-2, rtol=3e-2), \
        "bf16 mismatch vs reference"

    print("KERNEL_OK")
</pallas_src>

<mosaic_0001>
module attributes {stable_mosaic.version = 11 : i64} {
  func.func @_fused_attention_kernel(%arg0: i32, %arg1: i32, %arg2: memref<1x8x32xf32, #tpu.memory_space<vmem>>, %arg3: memref<1x8x32xf32, #tpu.memory_space<vmem>>, %arg4: memref<32x16xf32, #tpu.memory_space<vmem>>, %arg5: memref<32x32xf32, #tpu.memory_space<vmem>>, %arg6: memref<1x8x16xf32, #tpu.memory_space<vmem>>, %arg7: memref<8x16xf32, #tpu.memory_space<vmem>>, %arg8: memref<8x16xf32, #tpu.memory_space<vmem>>) attributes {dimension_semantics = [#tpu.dimension_semantics<parallel>, #tpu.dimension_semantics<arbitrary>], iteration_bounds = array<i64: 2, 1>, scalar_prefetch = 0 : i64, scratch_operands = 2 : i64, tpu.core_type = #tpu.core_type<tc>, window_params = [{transform_indices = @transform_0, window_bounds = array<i64: 1, 8, 32>}, {transform_indices = @transform_1, window_bounds = array<i64: 1, 8, 32>}, {pipeline_mode = #tpu.pipeline_mode<synchronous>, transform_indices = @transform_2, window_bounds = array<i64: 32, 16>}, {pipeline_mode = #tpu.pipeline_mode<synchronous>, transform_indices = @transform_3, window_bounds = array<i64: 32, 32>}, {transform_indices = @transform_4, window_bounds = array<i64: 1, 8, 16>}]} {
    %c0_i32 = arith.constant 0 : i32
    %0 = arith.cmpi eq, %arg1, %c0_i32 : i32
    %1 = arith.extui %0 : i1 to i32
    %c0_i32_0 = arith.constant 0 : i32
    %2 = arith.cmpi ne, %1, %c0_i32_0 : i32
    scf.if %2 {
      %c0_20 = arith.constant 0 : index
      %c0_21 = arith.constant 0 : index
      %c0_22 = arith.constant 0 : index
      %49 = vector.load %arg3[%c0_20, %c0_21, %c0_22] : memref<1x8x32xf32, #tpu.memory_space<vmem>>, vector<1x8x32xf32>
      %50 = vector.shape_cast %49 : vector<1x8x32xf32> to vector<8x32xf32>
      %c0_23 = arith.constant 0 : index
      %c0_24 = arith.constant 0 : index
      %51 = vector.load %arg5[%c0_23, %c0_24] : memref<32x32xf32, #tpu.memory_space<vmem>>, vector<32x32xf32>
      %cst_25 = arith.constant dense<0.000000e+00> : vector<8x32xf32>
      %52 = tpu.matmul %50, %51, %cst_25 {dimension_numbers = #tpu.dot_dimension_numbers<[1], [0], [0], [1], [0, 0, 1, 1], [], []>} : vector<8x32xf32>, vector<32x32xf32>, vector<8x32xf32> -> vector<8x32xf32>
      %53 = vector.extract_strided_slice %52 {offsets = [0, 0], sizes = [8, 16], strides = [1, 1]} : vector<8x32xf32> to vector<8x16xf32>
      %c0_26 = arith.constant 0 : index
      %c0_27 = arith.constant 0 : index
      %54 = vector.load %arg7[%c0_26, %c0_27] : memref<8x16xf32, #tpu.memory_space<vmem>>, vector<8x16xf32>
      tpu.vector_store %arg7[%c0_26, %c0_27], %53 {strides = array<i32>} : memref<8x16xf32, #tpu.memory_space<vmem>>, vector<8x16xf32>,
      %55 = vector.extract_strided_slice %52 {offsets = [0, 16], sizes = [8, 16], strides = [1, 1]} : vector<8x32xf32> to vector<8x16xf32>
      %c0_28 = arith.constant 0 : index
      %c0_29 = arith.constant 0 : index
      %56 = vector.load %arg8[%c0_28, %c0_29] : memref<8x16xf32, #tpu.memory_space<vmem>>, vector<8x16xf32>
      tpu.vector_store %arg8[%c0_28, %c0_29], %55 {strides = array<i32>} : memref<8x16xf32, #tpu.memory_space<vmem>>, vector<8x16xf32>,
    } else {
    }
    %c0 = arith.constant 0 : index
    %c0_1 = arith.constant 0 : index
    %c0_2 = arith.constant 0 : index
    %3 = vector.load %arg2[%c0, %c0_1, %c0_2] : memref<1x8x32xf32, #tpu.memory_space<vmem>>, vector<1x8x32xf32>
    %4 = vector.shape_cast %3 : vector<1x8x32xf32> to vector<8x32xf32>
    %c0_3 = arith.constant 0 : index
    %c0_4 = arith.constant 0 : index
    %5 = vector.load %arg4[%c0_3, %c0_4] : memref<32x16xf32, #tpu.memory_space<vmem>>, vector<32x16xf32>
    %cst = arith.constant dense<0.000000e+00> : vector<8x16xf32>
    %6 = tpu.matmul %4, %5, %cst {dimension_numbers = #tpu.dot_dimension_numbers<[1], [0], [0], [1], [0, 0, 1, 1], [], []>} : vector<8x32xf32>, vector<32x16xf32>, vector<8x16xf32> -> vector<8x16xf32>
    %cst_5 = arith.constant 0.176776692 : f32
    %7 = vector.broadcast %cst_5 : f32 to vector<8x16xf32>
    %8 = arith.mulf %6, %7 : vector<8x16xf32>
    %cst_6 = arith.constant 0xFF800000 : f32
    %9 = vector.broadcast %cst_6 : f32 to vector<8x1xf32>
    %cst_7 = arith.constant 0.000000e+00 : f32
    %10 = vector.broadcast %cst_7 : f32 to vector<8x1xf32>
    %cst_8 = arith.constant 0.000000e+00 : f32
    %11 = vector.broadcast %cst_8 : f32 to vector<8x16xf32>
    %c0_i32_9 = arith.constant 0 : i32
    %12 = arith.subi %arg1, %c0_i32_9 : i32
    %13 = arith.addi %c0_i32_9, %12 : i32
    %c1_i32 = arith.constant 1 : i32
    %14:3 = scf.for %arg9 = %c0_i32_9 to %13 step %c1_i32 iter_args(%arg10 = %9, %arg11 = %10, %arg12 = %11) -> (vector<8x1xf32>, vector<8x1xf32>, vector<8x16xf32>)  : i32 {
      %c8_i32_20 = arith.constant 8 : i32
      %49 = arith.muli %arg9, %c8_i32_20 : i32
      %50 = tpu.assume_multiple %49, 8 : i32
      %51 = arith.index_cast %50 : i32 to index
      %c0_21 = arith.constant 0 : index
      %52 = vector.load %arg7[%51, %c0_21] : memref<8x16xf32, #tpu.memory_space<vmem>>, vector<8x16xf32>
      %53 = arith.index_cast %50 : i32 to index
      %c0_22 = arith.constant 0 : index
      %54 = vector.load %arg8[%53, %c0_22] : memref<8x16xf32, #tpu.memory_space<vmem>>, vector<8x16xf32>
      %cst_23 = arith.constant dense<0.000000e+00> : vector<8x8xf32>
      %55 = tpu.matmul %8, %52, %cst_23 {dimension_numbers = #tpu.dot_dimension_numbers<[1], [1], [0], [0], [0, 0, 1, 0], [], []>} : vector<8x16xf32>, vector<8x16xf32>, vector<8x8xf32> -> vector<8x8xf32>
      %cst_24 = arith.constant dense<0xFF800000> : vector<8xf32>
      %56 = vector.multi_reduction <maximumf>, %55, %cst_24 [1] : vector<8x8xf32> to vector<8xf32>
      %57 = vector.shape_cast %56 : vector<8xf32> to vector<8x1xf32>
      %58 = arith.maximumf %arg10, %57 : vector<8x1xf32>
      %59 = arith.subf %arg10, %58 : vector<8x1xf32>
      %60 = math.exp %59 : vector<8x1xf32>
      %61 = vector.broadcast %58 : vector<8x1xf32> to vector<8x8xf32>
      %62 = arith.subf %55, %61 : vector<8x8xf32>
      %63 = math.exp %62 : vector<8x8xf32>
      %64 = arith.mulf %60, %arg11 : vector<8x1xf32>
      %cst_25 = arith.constant dense<0.000000e+00> : vector<8xf32>
      %65 = vector.multi_reduction <add>, %63, %cst_25 [1] : vector<8x8xf32> to vector<8xf32>
      %66 = vector.shape_cast %65 : vector<8xf32> to vector<8x1xf32>
      %67 = arith.addf %64, %66 : vector<8x1xf32>
      %68 = vector.broadcast %60 : vector<8x1xf32> to vector<8x16xf32>
      %69 = arith.mulf %68, %arg12 : vector<8x16xf32>
      %cst_26 = arith.constant dense<0.000000e+00> : vector<8x16xf32>
      %70 = tpu.matmul %63, %54, %cst_26 {dimension_numbers = #tpu.dot_dimension_numbers<[1], [0], [0], [1], [0, 0, 1, 1], [], []>} : vector<8x8xf32>, vector<8x16xf32>, vector<8x16xf32> -> vector<8x16xf32>
      %71 = arith.addf %69, %70 : vector<8x16xf32>
      scf.yield %58, %67, %71 : vector<8x1xf32>, vector<8x1xf32>, vector<8x16xf32>
    }
    %c8_i32 = arith.constant 8 : i32
    %15 = arith.muli %arg1, %c8_i32 : i32
    %16 = tpu.assume_multiple %15, 8 : i32
    %17 = arith.index_cast %16 : i32 to index
    %c0_10 = arith.constant 0 : index
    %18 = vector.load %arg7[%17, %c0_10] : memref<8x16xf32, #tpu.memory_space<vmem>>, vector<8x16xf32>
    %19 = arith.index_cast %16 : i32 to index
    %c0_11 = arith.constant 0 : index
    %20 = vector.load %arg8[%19, %c0_11] : memref<8x16xf32, #tpu.memory_space<vmem>>, vector<8x16xf32>
    %cst_12 = arith.constant dense<0.000000e+00> : vector<8x8xf32>
    %21 = tpu.matmul %8, %18, %cst_12 {dimension_numbers = #tpu.dot_dimension_numbers<[1], [1], [0], [0], [0, 0, 1, 0], [], []>} : vector<8x16xf32>, vector<8x16xf32>, vector<8x8xf32> -> vector<8x8xf32>
    %22 = tpu.iota {dimensions = array<i32: 0>} : vector<8x8xi32>
    %23 = tpu.iota {dimensions = array<i32: 1>} : vector<8x8xi32>
    %24 = arith.cmpi sle, %23, %22 : vector<8x8xi32>
    %cst_13 = arith.constant 0xFF800000 : f32
    %25 = vector.broadcast %cst_13 : f32 to vector<8x8xf32>
    %26 = arith.select %24, %21, %25 : vector<8x8xi1>, vector<8x8xf32>
    %cst_14 = arith.constant dense<0xFF800000> : vector<8xf32>
    %27 = vector.multi_reduction <maximumf>, %26, %cst_14 [1] : vector<8x8xf32> to vector<8xf32>
    %28 = vector.shape_cast %27 : vector<8xf32> to vector<8x1xf32>
    %29 = arith.maximumf %14#0, %28 : vector<8x1xf32>
    %30 = arith.subf %14#0, %29 : vector<8x1xf32>
    %31 = math.exp %30 : vector<8x1xf32>
    %32 = vector.broadcast %29 : vector<8x1xf32> to vector<8x8xf32>
    %33 = arith.subf %26, %32 : vector<8x8xf32>
    %34 = math.exp %33 : vector<8x8xf32>
    %35 = arith.mulf %31, %14#1 : vector<8x1xf32>
    %cst_15 = arith.constant dense<0.000000e+00> : vector<8xf32>
    %36 = vector.multi_reduction <add>, %34, %cst_15 [1] : vector<8x8xf32> to vector<8xf32>
    %37 = vector.shape_cast %36 : vector<8xf32> to vector<8x1xf32>
    %38 = arith.addf %35, %37 : vector<8x1xf32>
    %39 = vector.broadcast %31 : vector<8x1xf32> to vector<8x16xf32>
    %40 = arith.mulf %39, %14#2 : vector<8x16xf32>
    %cst_16 = arith.constant dense<0.000000e+00> : vector<8x16xf32>
    %41 = tpu.matmul %34, %20, %cst_16 {dimension_numbers = #tpu.dot_dimension_numbers<[1], [0], [0], [1], [0, 0, 1, 1], [], []>} : vector<8x8xf32>, vector<8x16xf32>, vector<8x16xf32> -> vector<8x16xf32>
    %42 = arith.addf %40, %41 : vector<8x16xf32>
    %43 = tpu.reciprocal %38 : vector<8x1xf32> -> vector<8x1xf32>
    %44 = vector.broadcast %43 : vector<8x1xf32> to vector<8x16xf32>
    %45 = arith.mulf %42, %44 : vector<8x16xf32>
    %c0_17 = arith.constant 0 : index
    %c0_18 = arith.constant 0 : index
    %c0_19 = arith.constant 0 : index
    %46 = vector.load %arg6[%c0_17, %c0_18, %c0_19] : memref<1x8x16xf32, #tpu.memory_space<vmem>>, vector<1x8x16xf32>
    %47 = vector.shape_cast %46 : vector<1x8x16xf32> to vector<8x16xf32>
    %48 = vector.shape_cast %45 : vector<8x16xf32> to vector<1x8x16xf32>
    tpu.vector_store %arg6[%c0_17, %c0_18, %c0_19], %48 {strides = array<i32>} : memref<1x8x16xf32, #tpu.memory_space<vmem>>, vector<1x8x16xf32>,
    return
  }
  func.func @transform_0(%arg0: i32, %arg1: i32) -> (i32, i32, i32) {
    %c0_i32 = arith.constant 0 : i32
    %c0_i32_0 = arith.constant 0 : i32
    return %arg0, %arg1, %c0_i32 : i32, i32, i32
  }
  func.func @transform_1(%arg0: i32, %arg1: i32) -> (i32, i32, i32) {
    %c0_i32 = arith.constant 0 : i32
    %c0_i32_0 = arith.constant 0 : i32
    %c0_i32_1 = arith.constant 0 : i32
    return %arg0, %c0_i32, %c0_i32_0 : i32, i32, i32
  }
  func.func @transform_2(%arg0: i32, %arg1: i32) -> (i32, i32) {
    %c0_i32 = arith.constant 0 : i32
    %c0_i32_0 = arith.constant 0 : i32
    %c0_i32_1 = arith.constant 0 : i32
    return %c0_i32, %c0_i32_0 : i32, i32
  }
  func.func @transform_3(%arg0: i32, %arg1: i32) -> (i32, i32) {
    %c0_i32 = arith.constant 0 : i32
    %c0_i32_0 = arith.constant 0 : i32
    %c0_i32_1 = arith.constant 0 : i32
    return %c0_i32, %c0_i32_0 : i32, i32
  }
  func.func @transform_4(%arg0: i32, %arg1: i32) -> (i32, i32, i32) {
    %c0_i32 = arith.constant 0 : i32
    %c0_i32_0 = arith.constant 0 : i32
    return %arg0, %arg1, %c0_i32 : i32, i32, i32
  }
}

</mosaic_0001>

<llo_original>
// kernel: tpu_custom_call.1
$region0: #{tpu_custom_call.1}
  #allocation0 [shape = 'u32[]', space=smem, size = 0x4, offset = 0x4, fixed_abs, tag = 'smem constant byte address 0x4 - core index']
  #allocation1 [shape = 'u32[72,128]{1,0:T(1,128)}', space=vmem, size = 0x9000, scoped, tag = 'internal scratch']
  #allocation2 [shape = 'f32[8,16]{1,0:T(8,128)}', space=vmem, size = 0x1000, scoped, tag = 'scratch operand']
  #allocation3 [shape = 'f32[8,16]{1,0:T(8,128)}', space=vmem, size = 0x1000, scoped, tag = 'scratch operand']
  %s0 = inlined_call_operand.vmem [shape: f32[2,8,32], index: 0, kind: input, shape index: {}]
  %s1 = inlined_call_operand.hbm [shape: f32[2,8,32], index: 1, kind: input, shape index: {}]
  %s2 = inlined_call_operand.vmem [shape: f32[32,16], index: 2, kind: input, shape index: {}]
  %s3 = inlined_call_operand.vmem [shape: f32[32,32], index: 3, kind: input, shape index: {}]
  %s4 = inlined_call_operand.hbm [shape: f32[2,8,16], index: 4, kind: output, shape index: {}]
  %s5 = sld [smem:[#allocation0]]
  $region64: #{tpu_custom_call.1} parent=0
    _
  %s7 = ssub.s32 1, %s5
  %s8 = scalar_select 0, %s7, %s5
  $region1: #{tpu_custom_call.1} parent=0
    #allocation4 [shape = 'u8[8192]{0}', space=vmem, size = 0x2000, scoped, tag = 'input window, operand 1']
    #allocation5 [shape = 's32[2]{0}', space=sflag, size = 0x8, scoped, tag = 'scoped memory for tpu_custom_call.1']
    #allocation6 [shape = 's32[2]{0}', space=sflag, size = 0x8, scoped, tag = 'scoped memory for tpu_custom_call.1']
    #allocation7 [shape = 'u8[8192]{0}', space=vmem, size = 0x2000, scoped, tag = 'output window, operand 0']
    %9 = vsyncpa [#allocation5], 0
    %s10 = scalar_lea.sflag [#allocation5], 1
    %11 = vsyncpa %s10, 0
    %12 = vsyncpa [#allocation6], 0
    %s13 = scalar_lea.sflag [#allocation6], 1
    %14 = vsyncpa %s13, 0
    loop: start=0, step=1, limit=4
    $region2: #{tpu_custom_call.1} parent=1 // loop_pre_header
      _
    $region3: #{tpu_custom_call.1} parent=1 // loop_header
      %s16 = sphi 0, %s20
      %p17 = scmp.ge.s32.totalorder %s16, 4
      %s23 = sphi 0, %s35
      %s24 = sphi 0, %s31
      %s25 = sphi 0, %s23
      %s26 = sphi 0, %s24
      %s27 = sphi 0, %s25
      %s28 = sphi 0, %s26
      %s40 = sphi 0, %s42
      %s43 = sphi 0, %s40
      %s44 = sphi 0, %s43
      %s60 = sphi 0, %s44
      %s66 = sphi 0, %s68
      %s69 = sphi 0, %s66
      %s70 = sphi 0, %s69
      %s86 = sphi 0, %s70
      %s90 = sphi 0, %s90
      %s92 = sphi 0, %s90
      %s93 = sphi 0, %s92
      %s107 = sphi 0, %s93
      %s111 = sphi 0, %s111
      %s113 = sphi 0, %s111
      %s114 = sphi 0, %s113
      %s128 = sphi 0, %s114
      %s136 = sphi 0, %s138
      %s139 = sphi 0, %s136
      %s140 = sphi 0, %s139
      %s156 = sphi 0, %s140
    $region4: #{tpu_custom_call.1} parent=1 // loop_header_branch
      %19 = sbr.rel (%p17) target = $region8
    $region5: #{tpu_custom_call.1} parent=1 // loop_body
      %s21 = ssub.s32 %s16, 1
      %s22 = ssub.s32 %s16, 2
      %s29 = sadd.s32 1, %s24
      %p30 = scmp.ge.s32.totalorder %s29, 1
      %s31 = scalar_select %p30, 0, %s29
      %s32 = sadd.s32 1, %s23
      %s33 = scalar_select %p30, %s32, %s23
      %p34 = scmp.ge.s32.totalorder %s33, 2
      %s35 = scalar_select %p34, 0, %s33
      %s36 = ssub.s32 %s23, %s35
      %s37 = ssub.s32 %s24, %s31
      %s38 = sor.u32 %s36, %s37
      %p39 = scmp.eq.s32.totalorder %s38, 0
      %s41 = sadd.s32 %s40, 1
      %s42 = scalar_select %p39, %s40, %s41
      %p45 = pneg %p39
      %p46 = scmp.eq.s32.totalorder %s16, 1
      %p47 = por %p45, %p46
      %p48 = scmp.ne.s32.totalorder %s40, %s43
      %p49 = scmp.eq.s32.totalorder %s16, 0
      %p50 = por %p48, %p49
      %p51 = scmp.ne.s32.totalorder %s40, %s43
      %p52 = scmp.eq.s32.totalorder %s21, 1
      %p53 = por %p51, %p52
      %p54 = scmp.ne.s32.totalorder %s43, %s44
      %p55 = scmp.eq.s32.totalorder %s21, 0
      %p56 = por %p54, %p55
      %p57 = scmp.ne.s32.totalorder %s43, %s44
      %p58 = scmp.eq.s32.totalorder %s22, 1
      %p59 = por %p57, %p58
      %p61 = scmp.ne.s32.totalorder %s44, %s60
      %p62 = scmp.eq.s32.totalorder %s22, 0
      %p63 = por %p61, %p62
      %s64 = ssub.s32 %s23, %s35
      %p65 = scmp.eq.s32.totalorder %s64, 0
      %s67 = sadd.s32 %s66, 1
      %s68 = scalar_select %p65, %s66, %s67
      %p71 = pneg %p65
      %p72 = scmp.eq.s32.totalorder %s16, 1
      %p73 = por %p71, %p72
      %p74 = scmp.ne.s32.totalorder %s66, %s69
      %p75 = scmp.eq.s32.totalorder %s16, 0
      %p76 = por %p74, %p75
      %p77 = scmp.ne.s32.totalorder %s66, %s69
      %p78 = scmp.eq.s32.totalorder %s21, 1
      %p79 = por %p77, %p78
      %p80 = scmp.ne.s32.totalorder %s69, %s70
      %p81 = scmp.eq.s32.totalorder %s21, 0
      %p82 = por %p80, %p81
      %p83 = scmp.ne.s32.totalorder %s69, %s70
      %p84 = scmp.eq.s32.totalorder %s22, 1
      %p85 = por %p83, %p84
      %p87 = scmp.ne.s32.totalorder %s70, %s86
      %p88 = scmp.eq.s32.totalorder %s22, 0
      %p89 = por %p87, %p88
      %s91 = sadd.s32 %s90, 1
      %p94 = scmp.eq.s32.totalorder %s16, 1
      %p95 = scmp.ne.s32.totalorder %s90, %s92
      %p96 = scmp.eq.s32.totalorder %s16, 0
      %p97 = por %p95, %p96
      %p98 = scmp.ne.s32.totalorder %s90, %s92
      %p99 = scmp.eq.s32.totalorder %s21, 1
      %p100 = por %p98, %p99
      %p101 = scmp.ne.s32.totalorder %s92, %s93
      %p102 = scmp.eq.s32.totalorder %s21, 0
      %p103 = por %p101, %p102
      %p104 = scmp.ne.s32.totalorder %s92, %s93
      %p105 = scmp.eq.s32.totalorder %s22, 1
      %p106 = por %p104, %p105
      %p108 = scmp.ne.s32.totalorder %s93, %s107
      %p109 = scmp.eq.s32.totalorder %s22, 0
      %p110 = por %p108, %p109
      %s112 = sadd.s32 %s111, 1
      %p115 = scmp.eq.s32.totalorder %s16, 1
      %p116 = scmp.ne.s32.totalorder %s111, %s113
      %p117 = scmp.eq.s32.totalorder %s16, 0
      %p118 = por %p116, %p117
      %p119 = scmp.ne.s32.totalorder %s111, %s113
      %p120 = scmp.eq.s32.totalorder %s21, 1
      %p121 = por %p119, %p120
      %p122 = scmp.ne.s32.totalorder %s113, %s114
      %p123 = scmp.eq.s32.totalorder %s21, 0
      %p124 = por %p122, %p123
      %p125 = scmp.ne.s32.totalorder %s113, %s114
      %p126 = scmp.eq.s32.totalorder %s22, 1
      %p127 = por %p125, %p126
      %p129 = scmp.ne.s32.totalorder %s114, %s128
      %p130 = scmp.eq.s32.totalorder %s22, 0
      %p131 = por %p129, %p130
      %s132 = ssub.s32 %s23, %s35
      %s133 = ssub.s32 %s24, %s31
      %s134 = sor.u32 %s132, %s133
      %p135 = scmp.eq.s32.totalorder %s134, 0
      %s137 = sadd.s32 %s136, 1
      %s138 = scalar_select %p135, %s136, %s137
      %p141 = pneg %p135
      %p142 = scmp.eq.s32.totalorder %s16, 1
      %p143 = por %p141, %p142
      %p144 = scmp.ne.s32.totalorder %s136, %s139
      %p145 = scmp.eq.s32.totalorder %s16, 0
      %p146 = por %p144, %p145
      %p147 = scmp.ne.s32.totalorder %s136, %s139
      %p148 = scmp.eq.s32.totalorder %s21, 1
      %p149 = por %p147, %p148
      %p150 = scmp.ne.s32.totalorder %s139, %s140
      %p151 = scmp.eq.s32.totalorder %s21, 0
      %p152 = por %p150, %p151
      %p153 = scmp.ne.s32.totalorder %s139, %s140
      %p154 = scmp.eq.s32.totalorder %s22, 1
      %p155 = por %p153, %p154
      %p157 = scmp.ne.s32.totalorder %s140, %s156
      %p158 = scmp.eq.s32.totalorder %s22, 0
      %p159 = por %p157, %p158
      %p160 = scmp.le.s32.totalorder 1, %s16
      %p161 = scmp.lt.s32.totalorder %s16, 3
      %p162 = pnand %p160, %p161
      %p163 = pneg %p162
      // Predicated region
      $region9: #{tpu_custom_call.1} parent=5 // pred_check
        _
      $region10: #{tpu_custom_call.1} parent=5 // pred_check_branch
        %165 = sbr.rel (%p162) target = $region12
      $region11: #{tpu_custom_call.1} parent=5 // pred_region
        %s166 = ssub.s32 %s16, 1
        // Predicated region
        $region13: #{tpu_custom_call.1} parent=11 // pred_check
          %p167 = pneg %p103
        $region14: #{tpu_custom_call.1} parent=11 // pred_check_branch
          %169 = sbr.rel (%p167) target = $region16
        $region15: #{tpu_custom_call.1} parent=11 // pred_region
          _
        $region16: #{tpu_custom_call.1} parent=11 // pred_fallthru
          _
        // Predicated region
        $region17: #{tpu_custom_call.1} parent=11 // pred_check
          %p170 = pneg %p124
        $region18: #{tpu_custom_call.1} parent=11 // pred_check_branch
          %172 = sbr.rel (%p170) target = $region20
        $region19: #{tpu_custom_call.1} parent=11 // pred_region
          _
        $region20: #{tpu_custom_call.1} parent=11 // pred_fallthru
          _
      $region12: #{tpu_custom_call.1} parent=5 // pred_fallthru
        _
      %p173 = scmp.lt.s32.totalorder %s16, 2
      // Predicated region
      $region21: #{tpu_custom_call.1} parent=5 // pred_check
        %p174 = pneg %p173
      $region22: #{tpu_custom_call.1} parent=5 // pred_check_branch
        %176 = sbr.rel (%p174) target = $region24
      $region23: #{tpu_custom_call.1} parent=5 // pred_region
        // Predicated region
        $region25: #{tpu_custom_call.1} parent=23 // pred_check
          %p177 = pneg %p50
        $region26: #{tpu_custom_call.1} parent=23 // pred_check_branch
          %179 = sbr.rel (%p177) target = $region28
        $region27: #{tpu_custom_call.1} parent=23 // pred_region
          %p180 = scmp.lt.s32.totalorder %s23, 1
          %s181 = scalar_select %p180, %s23, 1
          %p182 = scmp.lt.s32.totalorder %s24, 0
          %s183 = scalar_select %p182, %s24, 0
          %s184 = sadd.s32 %s183, %s181
          %s185 = smul.addr %s184, 8
          %s186 = scalar_lea.vmem %s0, %s185
        $region28: #{tpu_custom_call.1} parent=23 // pred_fallthru
          _
        // Predicated region
        $region29: #{tpu_custom_call.1} parent=23 // pred_check
          %p187 = pneg %p76
        $region30: #{tpu_custom_call.1} parent=23 // pred_check_branch
          %189 = sbr.rel (%p187) target = $region32
        $region31: #{tpu_custom_call.1} parent=23 // pred_region
          %s190 = sand.u32 %s66, 1
          %s191 = scalar_lea.sflag [#allocation5], %s190
          %s192 = sand.u32 %s66, 1
          %s193 = smul.addr %s192, 8
          %s194 = scalar_lea.vmem [#allocation4], %s193
          %196 = vsyncadd %s191, 0
          %s197 = smul.addr %s23, 8
          %s198 = scalar_lea.hbm %s1, %s197
          %s200 = sshll.u32 %s198, 4
          %s201 = int_to_ptr.hbm [resolvable:$true] %s200
          %s202 = sshll.u32 %s194, 4
          %s203 = int_to_ptr.vmem [resolvable:$true] %s202
          %205 = dma.hbm_to_vmem [thread:$0]  %s201, 128, %s203, %s191
        $region32: #{tpu_custom_call.1} parent=23 // pred_fallthru
          _
      $region24: #{tpu_custom_call.1} parent=5 // pred_fallthru
        _
      %p206 = scmp.le.s32.totalorder 1, %s16
      %p207 = scmp.lt.s32.totalorder %s16, 3
      %p208 = pnand %p206, %p207
      %p209 = pneg %p208
      // Predicated region
      $region33: #{tpu_custom_call.1} parent=5 // pred_check
        _
      $region34: #{tpu_custom_call.1} parent=5 // pred_check_branch
        %211 = sbr.rel (%p208) target = $region36
      $region35: #{tpu_custom_call.1} parent=5 // pred_region
        %s212 = ssub.s32 %s16, 1
        %s213 = sand.u32 %s69, 1
        %s214 = scalar_lea.sflag [#allocation5], %s213
        %s215 = sand.u32 %s69, 1
        %s216 = smul.addr %s215, 8
        %s217 = scalar_lea.vmem [#allocation4], %s216
        // Predicated region
        $region37: #{tpu_custom_call.1} parent=35 // pred_check
          %p218 = pneg %p82
        $region38: #{tpu_custom_call.1} parent=35 // pred_check_branch
          %220 = sbr.rel (%p218) target = $region40
        $region39: #{tpu_custom_call.1} parent=35 // pred_region
          %222 = dma.done %s214, 128
        $region40: #{tpu_custom_call.1} parent=35 // pred_fallthru
          _
        %p223 = scmp.lt.s32.totalorder %s25, 1
        %s224 = scalar_select %p223, %s25, 1
        %p225 = scmp.lt.s32.totalorder %s26, 0
        %s226 = scalar_select %p225, %s26, 0
        %s227 = sadd.s32 %s226, %s224
        %s228 = smul.addr %s227, 8
        %s229 = scalar_lea.vmem %s0, %s228
        %p230 = pneg %p56
        %p231 = pneg %p53
        %s232 = sand.u32 %s69, 1
        %s233 = scalar_lea.sflag [#allocation5], %s232
        %s234 = sand.u32 %s69, 1
        %s235 = smul.addr %s234, 8
        %s236 = scalar_lea.vmem [#allocation4], %s235
        %p237 = pneg %p82
        %p238 = pneg %p79
        %p239 = pneg %p103
        %p240 = pneg %p100
        %p241 = pneg %p124
        %p242 = pneg %p121
        %p243 = pneg %p152
        %p244 = pneg %p149
        %s245 = sand.u32 %s139, 1
        %s246 = scalar_lea.sflag [#allocation6], %s245
        %s247 = sand.u32 %s139, 1
        %s248 = smul.addr %s247, 8
        %s249 = scalar_lea.vmem [#allocation7], %s248
        %p250 = scmp.lt.s32.totalorder %s25, 1
        %s251 = scalar_select %p250, %s25, 1
        %p252 = scmp.lt.s32.totalorder %s26, 0
        %s253 = scalar_select %p252, %s26, 0
        %s254 = sadd.s32 %s253, %s251
        %s255 = smul.addr %s254, 8
        %s256 = scalar_lea.vmem %s0, %s255
        %p257 = scmp.eq.s32.totalorder %s26, 0
        // Predicated region
        $region41: #{tpu_custom_call.1} parent=35 // pred_check
          %p258 = pneg %p257
        $region42: #{tpu_custom_call.1} parent=35 // pred_check_branch
          %260 = sbr.rel (%p258) target = $region44
        $region43: #{tpu_custom_call.1} parent=35 // pred_region
          %v261 = vld [vmem:[%s217] sm:$0xff]
          %v262 = vld [vmem:[%s3] sm:$0xff]
          %v263 = vld [vmem:[%s3 + $0x8] sm:$0xff]
          %v264 = vld [vmem:[%s3 + $0x10] sm:$0xff]
          %v265 = vld [vmem:[%s3 + $0x18] sm:$0xff]
          %vm266 = vcmask 261120
          %v268 = vsel %vm266, %v261, 0
          %270 = vmatpush.msra.mxu0 0.0
          %271 = vmatpush.msra.mxu0 0.0
          %272 = vmatpush.msra.mxu0 0.0
          %273 = vmatpush.msra.mxu0 0.0
          %274 = vmatpush.msra.mxu0 0.0
          %275 = vmatpush.msra.mxu0 0.0
          %276 = vmatpush.msra.mxu0 0.0
          %277 = vmatpush.msra.mxu0 0.0
          %278 = vmatpush.msra.mxu0 0.0
          %279 = vmatpush.msra.mxu0 0.0
          %280 = vmatpush.msra.mxu0 0.0
          %281 = vmatpush.msra.mxu0 0.0
          %282 = vmatpush.msra.mxu0 %v265
          %283 = vmatpush.msra.mxu0 %v264
          %284 = vmatpush.msra.mxu0 %v263
          %285 = vmatpush.msra.mxu0 %v262
          %286 = vmatmul.f32.gmra.mxu0 %v268
          %v287 = vpop.f32.mrf.mxu0
          %v288 = vadd.f32 0.0, %v287
          %289 = vdwg.mxu0
          %vm290 = vcmask 130048
          %291 = vst.msk [vmem:[#allocation2] sm:$0xff] %vm290, %v288
          %293 = vrot.lane.b32.xlu0 %v288, 112
          %v294 = vpop.permute.xlu0 %293
          %296 = vst.msk [vmem:[#allocation3] sm:$0xff] %vm290, %v294
        $region44: #{tpu_custom_call.1} parent=35 // pred_fallthru
          _
        %v297 = vld [vmem:[%s256] sm:$0xff]
        %v298 = vld [vmem:[%s2] sm:$0xff]
        %v299 = vld [vmem:[%s2 + $0x8] sm:$0xff]
        %v300 = vld [vmem:[%s2 + $0x10] sm:$0xff]
        %v301 = vld [vmem:[%s2 + $0x18] sm:$0xff]
        %vm302 = vcmask 261120
        %v304 = vsel %vm302, %v297, 0
        %306 = vmatpush.msra.mxu0 0.0
        %307 = vmatpush.msra.mxu0 0.0
        %308 = vmatpush.msra.mxu0 0.0
        %309 = vmatpush.msra.mxu0 0.0
        %310 = vmatpush.msra.mxu0 0.0
        %311 = vmatpush.msra.mxu0 0.0
        %312 = vmatpush.msra.mxu0 0.0
        %313 = vmatpush.msra.mxu0 0.0
        %314 = vmatpush.msra.mxu0 0.0
        %315 = vmatpush.msra.mxu0 0.0
        %316 = vmatpush.msra.mxu0 0.0
        %317 = vmatpush.msra.mxu0 0.0
        %318 = vmatpush.msra.mxu0 %v301
        %319 = vmatpush.msra.mxu0 %v300
        %320 = vmatpush.msra.mxu0 %v299
        %321 = vmatpush.msra.mxu0 %v298
        %322 = vmatmul.f32.gmra.mxu0 %v304
        %v323 = vpop.f32.mrf.mxu0
        %v324 = vadd.f32 0.0, %v323
        %325 = vdwg.mxu0
        %v326 = vmul.f32 %v324, 0.17677669
        // While loop
        $region45: #{tpu_custom_call.1} parent=35 // loop_pre_header
          _
        $region46: #{tpu_custom_call.1} parent=35 // loop_header
          %s328 = sphi 0, %s330
          %p329 = scmp.ge.s32.totalorder %s328, %s26
          %v333 = vphi -inf, %v372
          %v334 = vphi 0.0, %v383
          %v335 = vphi 0.0, %v408
        $region47: #{tpu_custom_call.1} parent=35 // loop_header_branch
          %332 = sbr.rel (%p329) target = $region51
        $region48: #{tpu_custom_call.1} parent=35 // loop_body
          %s336 = smul.u32 %s328, 8
          %s337 = scalar_lea.vmem [#allocation2], %s336
          %v338 = vld [vmem:[%s337] sm:$0xff]
          %s339 = scalar_lea.vmem [#allocation3], %s336
          %v340 = vld [vmem:[%s339] sm:$0xff]
          %vm341 = vcmask 130048
          %v343 = vsel %vm341, %v326, 0
          %v346 = vsel %vm341, %v338, 0
          %348 = vmatpush.xpose.msra.mxu0 0.0
          %349 = vmatpush.xpose.msra.mxu0 0.0
          %350 = vmatpush.xpose.msra.mxu0 0.0
          %351 = vmatpush.xpose.msra.mxu0 0.0
          %352 = vmatpush.xpose.msra.mxu0 0.0
          %353 = vmatpush.xpose.msra.mxu0 0.0
          %354 = vmatpush.xpose.msra.mxu0 0.0
          %355 = vmatpush.xpose.msra.mxu0 0.0
          %356 = vmatpush.xpose.msra.mxu0 0.0
          %357 = vmatpush.xpose.msra.mxu0 0.0
          %358 = vmatpush.xpose.msra.mxu0 0.0
          %359 = vmatpush.xpose.msra.mxu0 0.0
          %360 = vmatpush.xpose.msra.mxu0 0.0
          %361 = vmatpush.xpose.msra.mxu0 0.0
          %362 = vmatpush.xpose.msra.mxu0 0.0
          %363 = vmatpush.xpose.msra.mxu0 %v346
          %364 = vmatmul.f32.gmra.mxu0 %v343
          %v365 = vpop.f32.mrf.mxu0
          %v366 = vadd.f32 0.0, %v365
          %367 = vdwg.mxu0
          %vm368 = vcmask 64512
          %v369 = vsel %vm368, %v366, -inf
          %370 = vmax.xlane.f32.xlu0 %v369
          %v371 = vpop.xlane.xlu0 %370
          %v372 = vmax.f32 %v333, %v371
          %v373 = vsub.f32 %v333, %v372
          %v374 = vmul.f32 %v373, 1.442695
          %v375 = vpow.pop %v374
          %v376 = vsub.f32 %v366, %v372
          %v377 = vmul.f32 %v376, 1.442695
          %v378 = vpow.pop %v377
          %v379 = vmul.f32 %v375, %v334
          %v380 = vsel %vm368, %v378, 0.0
          %381 = vadd.xlane.f32.xlu0 %v380
          %v382 = vpop.xlane.xlu0 %381
          %v383 = vadd.f32 %v379, %v382
          %v384 = vmul.f32 %v375, %v335
          %v386 = vsel %vm368, %v378, 0
          %388 = vmatpush.msra.mxu0 0.0
          %389 = vmatpush.msra.mxu0 0.0
          %390 = vmatpush.msra.mxu0 0.0
          %391 = vmatpush.msra.mxu0 0.0
          %392 = vmatpush.msra.mxu0 0.0
          %393 = vmatpush.msra.mxu0 0.0
          %394 = vmatpush.msra.mxu0 0.0
          %395 = vmatpush.msra.mxu0 0.0
          %396 = vmatpush.msra.mxu0 0.0
          %397 = vmatpush.msra.mxu0 0.0
          %398 = vmatpush.msra.mxu0 0.0
          %399 = vmatpush.msra.mxu0 0.0
          %400 = vmatpush.msra.mxu0 0.0
          %401 = vmatpush.msra.mxu0 0.0
          %402 = vmatpush.msra.mxu0 0.0
          %403 = vmatpush.msra.mxu0 %v340
          %404 = vmatmul.f32.gmra.mxu0 %v386
          %v405 = vpop.f32.mrf.mxu0
          %v406 = vadd.f32 0.0, %v405
          %407 = vdwg.mxu0
          %v408 = vadd.f32 %v384, %v406
        $region49: #{tpu_custom_call.1} parent=35 // loop_footer
          %s330 = sadd.s32 %s328, 1
        $region50: #{tpu_custom_call.1} parent=35 // loop_footer_branch
          %327 = sbr.rel target = $region46
        $region51: #{tpu_custom_call.1} parent=35 // loop_exit
          _
        %s409 = smul.u32 %s26, 8
        %s410 = scalar_lea.vmem [#allocation2], %s409
        %v411 = vld [vmem:[%s410] sm:$0xff]
        %s412 = scalar_lea.vmem [#allocation3], %s409
        %v413 = vld [vmem:[%s412] sm:$0xff]
        %vm414 = vcmask 130048
        %v416 = vsel %vm414, %v326, 0
        %v419 = vsel %vm414, %v411, 0
        %421 = vmatpush.xpose.msra.mxu0 0.0
        %422 = vmatpush.xpose.msra.mxu0 0.0
        %423 = vmatpush.xpose.msra.mxu0 0.0
        %424 = vmatpush.xpose.msra.mxu0 0.0
        %425 = vmatpush.xpose.msra.mxu0 0.0
        %426 = vmatpush.xpose.msra.mxu0 0.0
        %427 = vmatpush.xpose.msra.mxu0 0.0
        %428 = vmatpush.xpose.msra.mxu0 0.0
        %429 = vmatpush.xpose.msra.mxu0 0.0
        %430 = vmatpush.xpose.msra.mxu0 0.0
        %431 = vmatpush.xpose.msra.mxu0 0.0
        %432 = vmatpush.xpose.msra.mxu0 0.0
        %433 = vmatpush.xpose.msra.mxu0 0.0
        %434 = vmatpush.xpose.msra.mxu0 0.0
        %435 = vmatpush.xpose.msra.mxu0 0.0
        %436 = vmatpush.xpose.msra.mxu0 %v419
        %437 = vmatmul.f32.gmra.mxu0 %v416
        %v438 = vpop.f32.mrf.mxu0
        %v439 = vadd.f32 0.0, %v438
        %440 = vdwg.mxu0
        %v441 = vlaneseq
        %v442 = vshrl.u32 %v441, 7
        %v443 = vlaneseq
        %v444 = vand.u32 %v443, 127
        %vm445 = vcmp.le.s32.totalorder %v444, %v442
        %v446 = vsel %vm445, %v439, -inf
        %vm447 = vcmask 64512
        %v448 = vsel %vm447, %v446, -inf
        %449 = vmax.xlane.f32.xlu0 %v448
        %v450 = vpop.xlane.xlu0 %449
        %v451 = vmax.f32 %v333, %v450
        %v452 = vsub.f32 %v333, %v451
        %v453 = vmul.f32 %v452, 1.442695
        %v454 = vpow.pop %v453
        %v455 = vsub.f32 %v446, %v451
        %v456 = vmul.f32 %v455, 1.442695
        %v457 = vpow.pop %v456
        %v458 = vmul.f32 %v454, %v334
        %v459 = vsel %vm447, %v457, 0.0
        %460 = vadd.xlane.f32.xlu0 %v459
        %v461 = vpop.xlane.xlu0 %460
        %v462 = vadd.f32 %v458, %v461
        %v463 = vmul.f32 %v454, %v335
        %v465 = vsel %vm447, %v457, 0
        %467 = vmatpush.msra.mxu0 0.0
        %468 = vmatpush.msra.mxu0 0.0
        %469 = vmatpush.msra.mxu0 0.0
        %470 = vmatpush.msra.mxu0 0.0
        %471 = vmatpush.msra.mxu0 0.0
        %472 = vmatpush.msra.mxu0 0.0
        %473 = vmatpush.msra.mxu0 0.0
        %474 = vmatpush.msra.mxu0 0.0
        %475 = vmatpush.msra.mxu0 0.0
        %476 = vmatpush.msra.mxu0 0.0
        %477 = vmatpush.msra.mxu0 0.0
        %478 = vmatpush.msra.mxu0 0.0
        %479 = vmatpush.msra.mxu0 0.0
        %480 = vmatpush.msra.mxu0 0.0
        %481 = vmatpush.msra.mxu0 0.0
        %482 = vmatpush.msra.mxu0 %v413
        %483 = vmatmul.f32.gmra.mxu0 %v465
        %v484 = vpop.f32.mrf.mxu0
        %v485 = vadd.f32 0.0, %v484
        %486 = vdwg.mxu0
        %v487 = vadd.f32 %v463, %v485
        %v488 = vrcp.pop %v462
        %v489 = vmul.f32 %v462, %v488
        %v490 = vsub.f32 1.0, %v489
        %v491 = vmul.f32 %v488, %v490
        %v492 = vadd.f32 %v488, %v491
        %vm493 = vweird.f32 %v462
        %vm494 = vweird.f32 %v488
        %vm495 = vmor %vm493, %vm494
        %v496 = vsel %vm495, %v488, %v492
        %v497 = vand.u32 2147483647, %v462
        %vm498 = vcmp.eq.f32.partialorder %v497, 8.507059e+37
        %v499 = vand.u32 %v462, 2147483648
        %v500 = vor.u32 1.1754944e-38, %v499
        %v501 = vsel %vm498, %v500, %v496
        %v502 = vmul.f32 %v487, %v501
        %503 = vst.msk [vmem:[%s249] sm:$0xff] %vm414, %v502
        %s504 = sand.u32 %s139, 1
        %s505 = scalar_lea.sflag [#allocation6], %s504
        %s506 = sand.u32 %s139, 1
        %s507 = smul.addr %s506, 8
        %s508 = scalar_lea.vmem [#allocation7], %s507
        // Predicated region
        $region52: #{tpu_custom_call.1} parent=35 // pred_check
          %p509 = pneg %p149
        $region53: #{tpu_custom_call.1} parent=35 // pred_check_branch
          %511 = sbr.rel (%p509) target = $region55
        $region54: #{tpu_custom_call.1} parent=35 // pred_region
          %513 = vsyncadd %s505, 0
          %s514 = sadd.s32 %s26, %s25
          %s515 = smul.addr %s514, 8
          %s516 = scalar_lea.hbm %s4, %s515
          %s518 = sshll.u32 %s508, 4
          %s519 = int_to_ptr.vmem [resolvable:$true] %s518
          %s520 = sshll.u32 %s516, 4
          %s521 = int_to_ptr.hbm [resolvable:$true] %s520
          %523 = dma.vmem_to_hbm [thread:$0]  %s519, 128, %s521, %s505
        $region55: #{tpu_custom_call.1} parent=35 // pred_fallthru
          _
      $region36: #{tpu_custom_call.1} parent=5 // pred_fallthru
        _
      %p524 = scmp.le.s32.totalorder 2, %s16
      // Predicated region
      $region56: #{tpu_custom_call.1} parent=5 // pred_check
        %p525 = pneg %p524
      $region57: #{tpu_custom_call.1} parent=5 // pred_check_branch
        %527 = sbr.rel (%p525) target = $region59
      $region58: #{tpu_custom_call.1} parent=5 // pred_region
        %s528 = ssub.s32 %s16, 2
        // Predicated region
        $region60: #{tpu_custom_call.1} parent=58 // pred_check
          %p529 = pneg %p155
        $region61: #{tpu_custom_call.1} parent=58 // pred_check_branch
          %531 = sbr.rel (%p529) target = $region63
        $region62: #{tpu_custom_call.1} parent=58 // pred_region
          %s532 = sand.u32 %s140, 1
          %s533 = scalar_lea.sflag [#allocation6], %s532
          %s534 = sand.u32 %s140, 1
          %s535 = smul.addr %s534, 8
          %s536 = scalar_lea.vmem [#allocation7], %s535
          %538 = dma.done %s533, 128
        $region63: #{tpu_custom_call.1} parent=58 // pred_fallthru
          _
      $region59: #{tpu_custom_call.1} parent=5 // pred_fallthru
        _
    $region6: #{tpu_custom_call.1} parent=1 // loop_footer
      %s20 = sadd.s32 1, %s16
    $region7: #{tpu_custom_call.1} parent=1 // loop_footer_branch
      %15 = sbr.rel target = $region3
    $region8: #{tpu_custom_call.1} parent=1 // loop_exit
      _
    %539 = vsyncpa [#allocation5], 1
    %s540 = scalar_lea.sflag [#allocation5], 1
    %541 = vsyncpa %s540, 1
    %542 = vsyncpa [#allocation6], 1
    %s543 = scalar_lea.sflag [#allocation6], 1
    %544 = vsyncpa %s543, 1

</llo_original>
